<compile_context>
chip_gen: v6e
topology: v6e:2x2x1
jax: 0.10.0
libtpu: 0.0.40
codegen_flags: <defaults>
</compile_context>

<pallas_src>
import functools

import jax
import jax.numpy as jnp
from jax.experimental import pallas as pl
from jax.experimental.pallas import tpu as pltpu


def _round_up(v, m):
    return (v + m - 1) // m * m


def _kan_kernel(x_ref, expand_ref, knot_ref, cp_ref, out_ref, *, degree):
    """One batch tile.

    x_ref:      (TB, Fp)      input features (zero-padded to Fp lanes)
    expand_ref: (Fp, FNBp)    one-hot expansion matrix (resident)
    knot_ref:   (2+4*deg, FNBp) packed knot table (resident):
                row 0: degree-0 left knots  (padded lanes = +1e30)
                row 1: degree-0 right knots (padded lanes = -1e30)
                rows 2+4*(d-1)+{0,1,2,3}: t_k, t_{k+d+1}, 1/den_l,
                                          (1/den_r) * boundary_mask
    cp_ref:     (FNBp, Op)    repacked, zero-padded control points (resident,
                              bf16 by default)
    out_ref:    (TB, Op)      f32 output
    """
    x = x_ref[...]                       # (TB, Fp)
    kt = knot_ref[...]                   # (R, FNBp)

    # Expand x to the fused lane layout (lane l <- x[:, l // NB]) with a single
    # small MXU matmul against the one-hot expansion matrix -- replaces the
    # previous O(F) full-slab VPU select loop.
    xr = jnp.dot(x, expand_ref[...], preferred_element_type=jnp.float32)

    t0 = kt[0:1, :]
    t1 = kt[1:2, :]
    # degree-0 basis: 1 if knots[k] <= x < knots[k+1]  (all features at once).
    basis = jnp.where((xr >= t0) & (xr < t1), 1.0, 0.0).astype(jnp.float32)

    # Cox-de Boor recursion on the lane-dense slab.  Knot-only reciprocals
    # (with the 0/0 -> 0 convention and the feature-boundary mask folded in)
    # are precomputed, so each level is a handful of VPU mul/add + one shift.
    for d in range(1, degree + 1):
        r = 2 + 4 * (d - 1)
        tk = kt[r + 0:r + 1, :]
        tkd1 = kt[r + 1:r + 2, :]
        inv_l = kt[r + 2:r + 3, :]
        inv_r = kt[r + 3:r + 4, :]       # boundary/pad mask already folded in
        # N_{k+1, d-1}: shift left by one lane.  The wrapped / cross-feature
        # lane contributions are zeroed because inv_r == 0 there.
        shifted = jnp.roll(basis, shift=-1, axis=1)
        basis = (xr - tk) * inv_l * basis + (tkd1 - xr) * inv_r * shifted

    # One fused MXU matmul: (TB, FNBp) @ (FNBp, Op); bf16 operands (exact f32
    # when cp_ref is f32), f32 accumulation.
    out_ref[...] = jnp.dot(basis.astype(cp_ref.dtype), cp_ref[...],
                           preferred_element_type=jnp.float32)


def kan_layer_forward(x, knots, control_points, degree, *,
                      block_batch=None, mxu_dtype=jnp.bfloat16):
    """Pallas TPU implementation of KANLayer.forward.

    x:              (B, in_features) float32
    knots:          (num_knots + degree + 1,) float32
    control_points: (out_features, in_features, num_knots + degree) float32
    returns:        (B, out_features) float32
    """
    x = jnp.asarray(x, jnp.float32)
    knots = jnp.asarray(knots, jnp.float32)
    control_points = jnp.asarray(control_points, jnp.float32)

    B, F = x.shape
    O, F2, NB = control_points.shape
    assert F == F2
    assert knots.shape[0] == NB + 1  # num_knots + degree + 1

    FNB = F * NB
    FNBp = max(128, _round_up(FNB, 128))   # lane-dense contraction dim
    Op = max(128, _round_up(O, 128))       # lane-dense output dim
    Fp = _round_up(F, 8)                    # padded feature dim for the MXU

    # Clamp-pad knots so indices up to NB + degree are valid in the recursion.
    knots_p = jnp.concatenate(
        [knots, jnp.full((degree,), knots[-1], jnp.float32)])

    def tile_row(vec_nb, pad_value=0.0):
        row = jnp.tile(vec_nb, F)  # (F*NB,)
        return jnp.concatenate(
            [row, jnp.full((FNBp - FNB,), pad_value, jnp.float32)])

    # Mask that zeroes the per-feature boundary lane (k == NB-1); folded into
    # the 1/den_r rows so the kernel needs no extra multiply.  Padded lanes
    # are already zero from tile_row's default pad_value.
    mask_nb = jnp.where(jnp.arange(NB) != NB - 1, 1.0, 0.0).astype(jnp.float32)

    rows = [
        tile_row(knots_p[0:NB], 1e30),        # degree-0 left knots
        tile_row(knots_p[1:NB + 1], -1e30),   # degree-0 right knots
    ]
    for d in range(1, degree + 1):
        tk = knots_p[0:NB]
        tk1 = knots_p[1:NB + 1]
        tkd = knots_p[d:d + NB]
        tkd1 = knots_p[d + 1:d + 1 + NB]
        den_l = tkd - tk
        den_r = tkd1 - tk1
        inv_l = jnp.where(den_l != 0.0,
                          1.0 / jnp.where(den_l != 0.0, den_l, 1.0), 0.0)
        inv_r = jnp.where(den_r != 0.0,
                          1.0 / jnp.where(den_r != 0.0, den_r, 1.0), 0.0)
        inv_r = inv_r * mask_nb
        rows += [tile_row(tk), tile_row(tkd1), tile_row(inv_l), tile_row(inv_r)]
    knot_pack = jnp.stack(rows).astype(jnp.float32)      # (2 + 4*degree, FNBp)
    R = knot_pack.shape[0]

    # One-hot expansion matrix: xr[:, j*NB + k] = x[:, j] via one MXU matmul.
    lane_idx = jnp.arange(FNBp)
    expand = (((lane_idx[None, :] // NB) == jnp.arange(Fp)[:, None])
              & (lane_idx[None, :] < FNB)).astype(jnp.float32)   # (Fp, FNBp)

    # Control points repacked so the fused contraction is a plain matmul:
    # cp_packed[j*NB + k, o] = control_points[o, j, k]; zero-padded rows/cols.
    cp_flat = jnp.transpose(control_points, (1, 2, 0)).reshape(FNB, O)
    cp_packed = (jnp.zeros((FNBp, Op), jnp.float32)
                 .at[:FNB, :O].set(cp_flat).astype(mxu_dtype))

    # Batch tiling (multiple of 8 sublanes); pad B so the grid divides evenly.
    if block_batch is None:
        cap = 1024 if FNBp <= 512 else 512
        block_batch = min(cap, _round_up(B, 8))
        if B >= 16:
            # At least 2 grid steps so v7x's two TensorCores both get work.
            block_batch = min(block_batch, _round_up((B + 1) // 2, 8))
    TB = max(8, _round_up(block_batch, 8))
    B_pad = _round_up(B, TB)

    # Pad features to Fp and batch to B_pad.
    x_p = jnp.zeros((B_pad, Fp), jnp.float32).at[:B, :F].set(x)

    # VMEM budget: double-buffered x/out + resident tables + basis slab, with
    # 2x headroom, capped well under v7x's 64 MiB physical VMEM.
    cp_bytes = FNBp * Op * jnp.dtype(mxu_dtype).itemsize
    est = (2 * TB * Fp * 4 + 2 * TB * Op * 4 + 2 * R * FNBp * 4
           + 2 * Fp * FNBp * 4 + 2 * cp_bytes + 4 * TB * FNBp * 4)
    vmem_limit = int(min(max(32 << 20, 2 * est), 60 << 20))

    kernel = functools.partial(_kan_kernel, degree=degree)

    out_padded = pl.pallas_call(
        kernel,
        out_shape=jax.ShapeDtypeStruct((B_pad, Op), jnp.float32),
        grid=(B_pad // TB,),
        in_specs=[
            pl.BlockSpec((TB, Fp), lambda i: (i, 0)),      # x: per batch tile
            pl.BlockSpec((Fp, FNBp), lambda i: (0, 0)),    # expansion: resident
            pl.BlockSpec((R, FNBp), lambda i: (0, 0)),     # knot table: resident
            pl.BlockSpec((FNBp, Op), lambda i: (0, 0)),    # control pts: resident
        ],
        out_specs=pl.BlockSpec((TB, Op), lambda i: (i, 0)),
        compiler_params=pltpu.CompilerParams(
            dimension_semantics=("parallel",),
            vmem_limit_bytes=vmem_limit),
    )(x_p, expand, knot_pack, cp_packed)

    return out_padded[:B, :O]


def _reference(x, knots, control_points, degree, mxu_dtype=jnp.float32):
    """Pure-JAX per-feature reference (explicit division, concat-based shift).

    mxu_dtype rounds the matmul operands (basis, control points) the same way
    the kernel's MXU path does, while keeping f32 accumulation.
    """
    B, F = x.shape
    O, _, NB = control_points.shape
    knots_p = jnp.concatenate(
        [knots, jnp.full((degree,), knots[-1], knots.dtype)])
    out = jnp.zeros((B, O), jnp.float32)
    for j in range(F):
        xj = x[:, j:j + 1]  # (B, 1)
        basis = jnp.where(
            (xj >= knots_p[None, 0:NB]) & (xj < knots_p[None, 1:NB + 1]),
            1.0, 0.0).astype(jnp.float32)
        for d in range(1, degree + 1):
            tk = knots_p[None, d - d:NB]          # knots_p[0:NB]
            tk1 = knots_p[None, 1:NB + 1]
            tkd = knots_p[None, d:d + NB]
            tkd1 = knots_p[None, d + 1:d + 1 + NB]
            den_l = tkd - tk
            den_r = tkd1 - tk1
            shifted = jnp.concatenate(
                [basis[:, 1:], jnp.zeros_like(basis[:, :1])], axis=1)
            left = jnp.where(den_l != 0.0,
                             (xj - tk) / jnp.where(den_l != 0.0, den_l, 1.0),
                             0.0) * basis
            right = jnp.where(den_r != 0.0,
                              (tkd1 - xj) / jnp.where(den_r != 0.0, den_r, 1.0),
                              0.0) * shifted
            basis = left + right
        b_mm = basis.astype(mxu_dtype).astype(jnp.float32)
        cp_mm = control_points[:, j, :].astype(mxu_dtype).astype(jnp.float32)
        out = out + b_mm @ cp_mm.T
    return out


if __name__ == "__main__":
    # Small shapes consistent with the module's forward: x is (batch, in_features).
    batch = 32
    in_features = 4
    out_features = 6
    degree = 3
    num_knots = 10
    nb = num_knots + degree                       # basis / control-point width

    key = jax.random.PRNGKey(0)
    kx, kc = jax.random.split(key)

    # Deterministic parameter init (mirrors nn.Parameter shapes in __init__).
    knots = jnp.linspace(0.0, 1.0, num_knots + degree + 1).astype(jnp.float32)
    control_points = jax.random.normal(
        kc, (out_features, in_features, nb), dtype=jnp.float32)

    # Inputs in [0, 1) so they land inside the knot span.
    x = jax.random.uniform(kx, (batch, in_features), dtype=jnp.float32)

    # block_batch=8 exercises a multi-step batch-tiled grid even at this size.
    out = kan_layer_forward(x, knots, control_points, degree, block_batch=8)
    out = jax.block_until_ready(out)
    assert out.shape == (batch, out_features)

    # Tight check against a reference that applies the same bf16 rounding to
    # the MXU operands (validates all kernel plumbing exactly).
    ref_bf16 = _reference(x, knots, control_points, degree,
                          mxu_dtype=jnp.bfloat16)
    assert jnp.allclose(out, ref_bf16, atol=1e-2, rtol=1e-2), float(
        jnp.max(jnp.abs(out - ref_bf16)))

    # Loose sanity check against the exact f32 module semantics (bf16 MXU
    # operands are a documented, inference-friendly approximation).
    ref_f32 = _reference(x, knots, control_points, degree)
    assert jnp.allclose(out, ref_f32, atol=1e-1, rtol=1e-1), float(
        jnp.max(jnp.abs(out - ref_f32)))

    print("KERNEL_OK")
</pallas_src>

<mosaic_0001>
module attributes {stable_mosaic.version = 11 : i64} {
  func.func @_kan_kernel(%arg0: i32, %arg1: memref<8x8xf32, #tpu.memory_space<vmem>>, %arg2: memref<8x128xf32, #tpu.memory_space<vmem>>, %arg3: memref<14x128xf32, #tpu.memory_space<vmem>>, %arg4: memref<128x128xbf16, #tpu.memory_space<vmem>>, %arg5: memref<8x128xf32, #tpu.memory_space<vmem>>) attributes {dimension_semantics = [#tpu.dimension_semantics<parallel>], iteration_bounds = array<i64: 4>, scalar_prefetch = 0 : i64, scratch_operands = 0 : i64, tpu.core_type = #tpu.core_type<tc>, window_params = [{transform_indices = @transform_0, window_bounds = array<i64: 8, 8>}, {pipeline_mode = #tpu.pipeline_mode<synchronous>, transform_indices = @transform_1, window_bounds = array<i64: 8, 128>}, {pipeline_mode = #tpu.pipeline_mode<synchronous>, transform_indices = @transform_2, window_bounds = array<i64: 14, 128>}, {pipeline_mode = #tpu.pipeline_mode<synchronous>, transform_indices = @transform_3, window_bounds = array<i64: 128, 128>}, {transform_indices = @transform_4, window_bounds = array<i64: 8, 128>}]} {
    %c0 = arith.constant 0 : index
    %c0_0 = arith.constant 0 : index
    %0 = vector.load %arg1[%c0, %c0_0] : memref<8x8xf32, #tpu.memory_space<vmem>>, vector<8x8xf32>
    %c0_1 = arith.constant 0 : index
    %c0_2 = arith.constant 0 : index
    %1 = vector.load %arg3[%c0_1, %c0_2] : memref<14x128xf32, #tpu.memory_space<vmem>>, vector<14x128xf32>
    %c0_3 = arith.constant 0 : index
    %c0_4 = arith.constant 0 : index
    %2 = vector.load %arg2[%c0_3, %c0_4] : memref<8x128xf32, #tpu.memory_space<vmem>>, vector<8x128xf32>
    %cst = arith.constant dense<0.000000e+00> : vector<8x128xf32>
    %3 = tpu.matmul %0, %2, %cst {dimension_numbers = #tpu.dot_dimension_numbers<[1], [0], [0], [1], [0, 0, 1, 1], [], []>} : vector<8x8xf32>, vector<8x128xf32>, vector<8x128xf32> -> vector<8x128xf32>
    %4 = vector.extract_strided_slice %1 {offsets = [0, 0], sizes = [1, 128], strides = [1, 1]} : vector<14x128xf32> to vector<1x128xf32>
    %5 = vector.extract_strided_slice %1 {offsets = [1, 0], sizes = [1, 128], strides = [1, 1]} : vector<14x128xf32> to vector<1x128xf32>
    %6 = vector.broadcast %4 : vector<1x128xf32> to vector<8x128xf32>
    %7 = arith.cmpf oge, %3, %6 : vector<8x128xf32>
    %8 = vector.broadcast %5 : vector<1x128xf32> to vector<8x128xf32>
    %9 = arith.cmpf olt, %3, %8 : vector<8x128xf32>
    %10 = arith.andi %7, %9 : vector<8x128xi1>
    %cst_5 = arith.constant 1.000000e+00 : f32
    %cst_6 = arith.constant 0.000000e+00 : f32
    %11 = vector.broadcast %cst_5 : f32 to vector<8x128xf32>
    %12 = vector.broadcast %cst_6 : f32 to vector<8x128xf32>
    %13 = arith.select %10, %11, %12 : vector<8x128xi1>, vector<8x128xf32>
    %14 = vector.extract_strided_slice %1 {offsets = [2, 0], sizes = [1, 128], strides = [1, 1]} : vector<14x128xf32> to vector<1x128xf32>
    %15 = vector.extract_strided_slice %1 {offsets = [3, 0], sizes = [1, 128], strides = [1, 1]} : vector<14x128xf32> to vector<1x128xf32>
    %16 = vector.extract_strided_slice %1 {offsets = [4, 0], sizes = [1, 128], strides = [1, 1]} : vector<14x128xf32> to vector<1x128xf32>
    %17 = vector.extract_strided_slice %1 {offsets = [5, 0], sizes = [1, 128], strides = [1, 1]} : vector<14x128xf32> to vector<1x128xf32>
    %18 = vector.extract_strided_slice %13 {offsets = [0, 1], sizes = [8, 127], strides = [1, 1]} : vector<8x128xf32> to vector<8x127xf32>
    %19 = vector.extract_strided_slice %13 {offsets = [0, 0], sizes = [8, 1], strides = [1, 1]} : vector<8x128xf32> to vector<8x1xf32>
    %20 = tpu.concatenate %18, %19 in 1 : vector<8x127xf32>, vector<8x1xf32> -> vector<8x128xf32>
    %21 = vector.broadcast %14 : vector<1x128xf32> to vector<8x128xf32>
    %22 = arith.subf %3, %21 : vector<8x128xf32>
    %23 = vector.broadcast %16 : vector<1x128xf32> to vector<8x128xf32>
    %24 = arith.mulf %22, %23 : vector<8x128xf32>
    %25 = arith.mulf %24, %13 : vector<8x128xf32>
    %26 = vector.broadcast %15 : vector<1x128xf32> to vector<8x128xf32>
    %27 = arith.subf %26, %3 : vector<8x128xf32>
    %28 = vector.broadcast %17 : vector<1x128xf32> to vector<8x128xf32>
    %29 = arith.mulf %27, %28 : vector<8x128xf32>
    %30 = arith.mulf %29, %20 : vector<8x128xf32>
    %31 = arith.addf %25, %30 : vector<8x128xf32>
    %32 = vector.extract_strided_slice %1 {offsets = [6, 0], sizes = [1, 128], strides = [1, 1]} : vector<14x128xf32> to vector<1x128xf32>
    %33 = vector.extract_strided_slice %1 {offsets = [7, 0], sizes = [1, 128], strides = [1, 1]} : vector<14x128xf32> to vector<1x128xf32>
    %34 = vector.extract_strided_slice %1 {offsets = [8, 0], sizes = [1, 128], strides = [1, 1]} : vector<14x128xf32> to vector<1x128xf32>
    %35 = vector.extract_strided_slice %1 {offsets = [9, 0], sizes = [1, 128], strides = [1, 1]} : vector<14x128xf32> to vector<1x128xf32>
    %36 = vector.extract_strided_slice %31 {offsets = [0, 1], sizes = [8, 127], strides = [1, 1]} : vector<8x128xf32> to vector<8x127xf32>
    %37 = vector.extract_strided_slice %31 {offsets = [0, 0], sizes = [8, 1], strides = [1, 1]} : vector<8x128xf32> to vector<8x1xf32>
    %38 = tpu.concatenate %36, %37 in 1 : vector<8x127xf32>, vector<8x1xf32> -> vector<8x128xf32>
    %39 = vector.broadcast %32 : vector<1x128xf32> to vector<8x128xf32>
    %40 = arith.subf %3, %39 : vector<8x128xf32>
    %41 = vector.broadcast %34 : vector<1x128xf32> to vector<8x128xf32>
    %42 = arith.mulf %40, %41 : vector<8x128xf32>
    %43 = arith.mulf %42, %31 : vector<8x128xf32>
    %44 = vector.broadcast %33 : vector<1x128xf32> to vector<8x128xf32>
    %45 = arith.subf %44, %3 : vector<8x128xf32>
    %46 = vector.broadcast %35 : vector<1x128xf32> to vector<8x128xf32>
    %47 = arith.mulf %45, %46 : vector<8x128xf32>
    %48 = arith.mulf %47, %38 : vector<8x128xf32>
    %49 = arith.addf %43, %48 : vector<8x128xf32>
    %50 = vector.extract_strided_slice %1 {offsets = [10, 0], sizes = [1, 128], strides = [1, 1]} : vector<14x128xf32> to vector<1x128xf32>
    %51 = vector.extract_strided_slice %1 {offsets = [11, 0], sizes = [1, 128], strides = [1, 1]} : vector<14x128xf32> to vector<1x128xf32>
    %52 = vector.extract_strided_slice %1 {offsets = [12, 0], sizes = [1, 128], strides = [1, 1]} : vector<14x128xf32> to vector<1x128xf32>
    %53 = vector.extract_strided_slice %1 {offsets = [13, 0], sizes = [1, 128], strides = [1, 1]} : vector<14x128xf32> to vector<1x128xf32>
    %54 = vector.extract_strided_slice %49 {offsets = [0, 1], sizes = [8, 127], strides = [1, 1]} : vector<8x128xf32> to vector<8x127xf32>
    %55 = vector.extract_strided_slice %49 {offsets = [0, 0], sizes = [8, 1], strides = [1, 1]} : vector<8x128xf32> to vector<8x1xf32>
    %56 = tpu.concatenate %54, %55 in 1 : vector<8x127xf32>, vector<8x1xf32> -> vector<8x128xf32>
    %57 = vector.broadcast %50 : vector<1x128xf32> to vector<8x128xf32>
    %58 = arith.subf %3, %57 : vector<8x128xf32>
    %59 = vector.broadcast %52 : vector<1x128xf32> to vector<8x128xf32>
    %60 = arith.mulf %58, %59 : vector<8x128xf32>
    %61 = arith.mulf %60, %49 : vector<8x128xf32>
    %62 = vector.broadcast %51 : vector<1x128xf32> to vector<8x128xf32>
    %63 = arith.subf %62, %3 : vector<8x128xf32>
    %64 = vector.broadcast %53 : vector<1x128xf32> to vector<8x128xf32>
    %65 = arith.mulf %63, %64 : vector<8x128xf32>
    %66 = arith.mulf %65, %56 : vector<8x128xf32>
    %67 = arith.addf %61, %66 : vector<8x128xf32>
    %68 = arith.truncf %67 : vector<8x128xf32> to vector<8x128xbf16>
    %c0_7 = arith.constant 0 : index
    %c0_8 = arith.constant 0 : index
    %69 = vector.load %arg4[%c0_7, %c0_8] : memref<128x128xbf16, #tpu.memory_space<vmem>>, vector<128x128xbf16>
    %cst_9 = arith.constant dense<0.000000e+00> : vector<8x128xf32>
    %70 = tpu.matmul %68, %69, %cst_9 {dimension_numbers = #tpu.dot_dimension_numbers<[1], [0], [0], [1], [0, 0, 1, 1], [], []>} : vector<8x128xbf16>, vector<128x128xbf16>, vector<8x128xf32> -> vector<8x128xf32>
    %c0_10 = arith.constant 0 : index
    %c0_11 = arith.constant 0 : index
    %71 = vector.load %arg5[%c0_10, %c0_11] : memref<8x128xf32, #tpu.memory_space<vmem>>, vector<8x128xf32>
    tpu.vector_store %arg5[%c0_10, %c0_11], %70 {strides = array<i32>} : memref<8x128xf32, #tpu.memory_space<vmem>>, vector<8x128xf32>,
    return
  }
  func.func @transform_0(%arg0: i32) -> (i32, i32) {
    %c0_i32 = arith.constant 0 : i32
    %c0_i32_0 = arith.constant 0 : i32
    return %arg0, %c0_i32 : i32, i32
  }
  func.func @transform_1(%arg0: i32) -> (i32, i32) {
    %c0_i32 = arith.constant 0 : i32
    %c0_i32_0 = arith.constant 0 : i32
    %c0_i32_1 = arith.constant 0 : i32
    return %c0_i32, %c0_i32_0 : i32, i32
  }
  func.func @transform_2(%arg0: i32) -> (i32, i32) {
    %c0_i32 = arith.constant 0 : i32
    %c0_i32_0 = arith.constant 0 : i32
    %c0_i32_1 = arith.constant 0 : i32
    return %c0_i32, %c0_i32_0 : i32, i32
  }
  func.func @transform_3(%arg0: i32) -> (i32, i32) {
    %c0_i32 = arith.constant 0 : i32
    %c0_i32_0 = arith.constant 0 : i32
    %c0_i32_1 = arith.constant 0 : i32
    return %c0_i32, %c0_i32_0 : i32, i32
  }
  func.func @transform_4(%arg0: i32) -> (i32, i32) {
    %c0_i32 = arith.constant 0 : i32
    %c0_i32_0 = arith.constant 0 : i32
    return %arg0, %c0_i32 : i32, i32
  }
}

</mosaic_0001>

<llo_original>
// kernel: tpu_custom_call.1
$region0: #{tpu_custom_call.1}
  #allocation0 [shape = 'u32[]', space=smem, size = 0x4, offset = 0x4, fixed_abs, tag = 'smem constant byte address 0x4 - core index']
  #allocation1 [shape = 'u32[144,128]{1,0:T(1,128)}', space=vmem, size = 0x12000, scoped, tag = 'internal scratch']
  %s0 = inlined_call_operand.vmem [shape: f32[32,8], index: 0, kind: input, shape index: {}]
  %s1 = inlined_call_operand.vmem [shape: f32[8,128], index: 1, kind: input, shape index: {}]
  %s2 = inlined_call_operand.vmem [shape: f32[14,128], index: 2, kind: input, shape index: {}]
  %s3 = inlined_call_operand.hbm [shape: bf16[128,128], index: 3, kind: input, shape index: {}]
  %s4 = inlined_call_operand.hbm [shape: f32[32,128], index: 4, kind: output, shape index: {}]
  %s5 = sld [smem:[#allocation0]]
  $region53: #{tpu_custom_call.1} parent=0
    _
  %s7 = ssub.s32 1, %s5
  %s8 = scalar_select 0, %s7, %s5
  $region1: #{tpu_custom_call.1} parent=0
    #allocation2 [shape = 'u8[32768]{0}', space=vmem, size = 0x8000, scoped, tag = 'input window, operand 3, single buffered']
    #allocation3 [shape = 's32[2]{0}', space=sflag, size = 0x8, scoped, tag = 'scoped memory for tpu_custom_call.1']
    #allocation4 [shape = 's32[2]{0}', space=sflag, size = 0x8, scoped, tag = 'scoped memory for tpu_custom_call.1']
    #allocation5 [shape = 'u8[8192]{0}', space=vmem, size = 0x2000, scoped, tag = 'output window, operand 0']
    %9 = vsyncpa [#allocation3], 0
    %10 = vsyncpa [#allocation4], 0
    %s11 = scalar_lea.sflag [#allocation4], 1
    %12 = vsyncpa %s11, 0
    loop: start=0, step=1, limit=6
    $region2: #{tpu_custom_call.1} parent=1 // loop_pre_header
      _
    $region3: #{tpu_custom_call.1} parent=1 // loop_header
      %s14 = sphi 0, %s18
      %p15 = scmp.ge.s32.totalorder %s14, 6
      %s24 = sphi 0, %s26
      %s27 = sphi 0, %s24
      %s28 = sphi 0, %s27
      %s44 = sphi 0, %s28
      %s48 = sphi 0, %s48
      %s50 = sphi 0, %s48
      %s51 = sphi 0, %s50
      %s65 = sphi 0, %s51
      %s69 = sphi 0, %s69
      %s71 = sphi 0, %s69
      %s72 = sphi 0, %s71
      %s86 = sphi 0, %s72
      %s90 = sphi 0, %s90
      %s92 = sphi 0, %s90
      %s93 = sphi 0, %s92
      %s107 = sphi 0, %s93
      %s113 = sphi 0, %s115
      %s116 = sphi 0, %s113
      %s117 = sphi 0, %s116
      %s133 = sphi 0, %s117
    $region4: #{tpu_custom_call.1} parent=1 // loop_header_branch
      %17 = sbr.rel (%p15) target = $region8
    $region5: #{tpu_custom_call.1} parent=1 // loop_body
      %s19 = ssub.s32 %s14, 1
      %s20 = ssub.s32 %s14, 2
      %s21 = sadd.s32 %s14, 1
      %s22 = ssub.s32 %s14, %s21
      %p23 = scmp.eq.s32.totalorder %s22, 0
      %s25 = sadd.s32 %s24, 1
      %s26 = scalar_select %p23, %s24, %s25
      %p29 = pneg %p23
      %p30 = scmp.eq.s32.totalorder %s14, 3
      %p31 = por %p29, %p30
      %p32 = scmp.ne.s32.totalorder %s24, %s27
      %p33 = scmp.eq.s32.totalorder %s14, 0
      %p34 = por %p32, %p33
      %p35 = scmp.ne.s32.totalorder %s24, %s27
      %p36 = scmp.eq.s32.totalorder %s19, 3
      %p37 = por %p35, %p36
      %p38 = scmp.ne.s32.totalorder %s27, %s28
      %p39 = scmp.eq.s32.totalorder %s19, 0
      %p40 = por %p38, %p39
      %p41 = scmp.ne.s32.totalorder %s27, %s28
      %p42 = scmp.eq.s32.totalorder %s20, 3
      %p43 = por %p41, %p42
      %p45 = scmp.ne.s32.totalorder %s28, %s44
      %p46 = scmp.eq.s32.totalorder %s20, 0
      %p47 = por %p45, %p46
      %s49 = sadd.s32 %s48, 1
      %p52 = scmp.eq.s32.totalorder %s14, 3
      %p53 = scmp.ne.s32.totalorder %s48, %s50
      %p54 = scmp.eq.s32.totalorder %s14, 0
      %p55 = por %p53, %p54
      %p56 = scmp.ne.s32.totalorder %s48, %s50
      %p57 = scmp.eq.s32.totalorder %s19, 3
      %p58 = por %p56, %p57
      %p59 = scmp.ne.s32.totalorder %s50, %s51
      %p60 = scmp.eq.s32.totalorder %s19, 0
      %p61 = por %p59, %p60
      %p62 = scmp.ne.s32.totalorder %s50, %s51
      %p63 = scmp.eq.s32.totalorder %s20, 3
      %p64 = por %p62, %p63
      %p66 = scmp.ne.s32.totalorder %s51, %s65
      %p67 = scmp.eq.s32.totalorder %s20, 0
      %p68 = por %p66, %p67
      %s70 = sadd.s32 %s69, 1
      %p73 = scmp.eq.s32.totalorder %s14, 3
      %p74 = scmp.ne.s32.totalorder %s69, %s71
      %p75 = scmp.eq.s32.totalorder %s14, 0
      %p76 = por %p74, %p75
      %p77 = scmp.ne.s32.totalorder %s69, %s71
      %p78 = scmp.eq.s32.totalorder %s19, 3
      %p79 = por %p77, %p78
      %p80 = scmp.ne.s32.totalorder %s71, %s72
      %p81 = scmp.eq.s32.totalorder %s19, 0
      %p82 = por %p80, %p81
      %p83 = scmp.ne.s32.totalorder %s71, %s72
      %p84 = scmp.eq.s32.totalorder %s20, 3
      %p85 = por %p83, %p84
      %p87 = scmp.ne.s32.totalorder %s72, %s86
      %p88 = scmp.eq.s32.totalorder %s20, 0
      %p89 = por %p87, %p88
      %s91 = sadd.s32 %s90, 1
      %p94 = scmp.eq.s32.totalorder %s14, 3
      %p95 = scmp.ne.s32.totalorder %s90, %s92
      %p96 = scmp.eq.s32.totalorder %s14, 0
      %p97 = por %p95, %p96
      %p98 = scmp.ne.s32.totalorder %s90, %s92
      %p99 = scmp.eq.s32.totalorder %s19, 3
      %p100 = por %p98, %p99
      %p101 = scmp.ne.s32.totalorder %s92, %s93
      %p102 = scmp.eq.s32.totalorder %s19, 0
      %p103 = por %p101, %p102
      %p104 = scmp.ne.s32.totalorder %s92, %s93
      %p105 = scmp.eq.s32.totalorder %s20, 3
      %p106 = por %p104, %p105
      %p108 = scmp.ne.s32.totalorder %s93, %s107
      %p109 = scmp.eq.s32.totalorder %s20, 0
      %p110 = por %p108, %p109
      %s111 = ssub.s32 %s14, %s21
      %p112 = scmp.eq.s32.totalorder %s111, 0
      %s114 = sadd.s32 %s113, 1
      %s115 = scalar_select %p112, %s113, %s114
      %p118 = pneg %p112
      %p119 = scmp.eq.s32.totalorder %s14, 3
      %p120 = por %p118, %p119
      %p121 = scmp.ne.s32.totalorder %s113, %s116
      %p122 = scmp.eq.s32.totalorder %s14, 0
      %p123 = por %p121, %p122
      %p124 = scmp.ne.s32.totalorder %s113, %s116
      %p125 = scmp.eq.s32.totalorder %s19, 3
      %p126 = por %p124, %p125
      %p127 = scmp.ne.s32.totalorder %s116, %s117
      %p128 = scmp.eq.s32.totalorder %s19, 0
      %p129 = por %p127, %p128
      %p130 = scmp.ne.s32.totalorder %s116, %s117
      %p131 = scmp.eq.s32.totalorder %s20, 3
      %p132 = por %p130, %p131
      %p134 = scmp.ne.s32.totalorder %s117, %s133
      %p135 = scmp.eq.s32.totalorder %s20, 0
      %p136 = por %p134, %p135
      %p137 = scmp.le.s32.totalorder 1, %s14
      %p138 = scmp.lt.s32.totalorder %s14, 5
      %p139 = pnand %p137, %p138
      %p140 = pneg %p139
      // Predicated region
      $region9: #{tpu_custom_call.1} parent=5 // pred_check
        _
      $region10: #{tpu_custom_call.1} parent=5 // pred_check_branch
        %142 = sbr.rel (%p139) target = $region12
      $region11: #{tpu_custom_call.1} parent=5 // pred_region
        %s143 = ssub.s32 %s14, 1
        // Predicated region
        $region13: #{tpu_custom_call.1} parent=11 // pred_check
          %p144 = pneg %p61
        $region14: #{tpu_custom_call.1} parent=11 // pred_check_branch
          %146 = sbr.rel (%p144) target = $region16
        $region15: #{tpu_custom_call.1} parent=11 // pred_region
          _
        $region16: #{tpu_custom_call.1} parent=11 // pred_fallthru
          _
        // Predicated region
        $region17: #{tpu_custom_call.1} parent=11 // pred_check
          %p147 = pneg %p82
        $region18: #{tpu_custom_call.1} parent=11 // pred_check_branch
          %149 = sbr.rel (%p147) target = $region20
        $region19: #{tpu_custom_call.1} parent=11 // pred_region
          _
        $region20: #{tpu_custom_call.1} parent=11 // pred_fallthru
          _
        // Predicated region
        $region21: #{tpu_custom_call.1} parent=11 // pred_check
          %p150 = pneg %p103
        $region22: #{tpu_custom_call.1} parent=11 // pred_check_branch
          %152 = sbr.rel (%p150) target = $region24
        $region23: #{tpu_custom_call.1} parent=11 // pred_region
          %s154 = ssub.s32 1024, 1024
          %155 = vsyncadd [#allocation3], %s154
          %s156 = sshll.u32 [#allocation2], 4
          %s157 = int_to_ptr.vmem [resolvable:$true] %s156
          %162 = dma.hbm_to_vmem [thread:$0]  %s3, 1024, %s157, [#allocation3], 64, 64, 4
        $region24: #{tpu_custom_call.1} parent=11 // pred_fallthru
          _
      $region12: #{tpu_custom_call.1} parent=5 // pred_fallthru
        _
      %p163 = scmp.lt.s32.totalorder %s14, 4
      // Predicated region
      $region25: #{tpu_custom_call.1} parent=5 // pred_check
        %p164 = pneg %p163
      $region26: #{tpu_custom_call.1} parent=5 // pred_check_branch
        %166 = sbr.rel (%p164) target = $region28
      $region27: #{tpu_custom_call.1} parent=5 // pred_region
        // Predicated region
        $region29: #{tpu_custom_call.1} parent=27 // pred_check
          %p167 = pneg %p34
        $region30: #{tpu_custom_call.1} parent=27 // pred_check_branch
          %169 = sbr.rel (%p167) target = $region32
        $region31: #{tpu_custom_call.1} parent=27 // pred_region
          %p170 = scmp.lt.s32.totalorder %s14, 3
          %s171 = scalar_select %p170, %s14, 3
          %s172 = smul.addr %s171, 8
          %s173 = scalar_lea.vmem %s0, %s172
        $region32: #{tpu_custom_call.1} parent=27 // pred_fallthru
          _
      $region28: #{tpu_custom_call.1} parent=5 // pred_fallthru
        _
      %p174 = scmp.le.s32.totalorder 1, %s14
      %p175 = scmp.lt.s32.totalorder %s14, 5
      %p176 = pnand %p174, %p175
      %p177 = pneg %p176
      // Predicated region
      $region33: #{tpu_custom_call.1} parent=5 // pred_check
        _
      $region34: #{tpu_custom_call.1} parent=5 // pred_check_branch
        %179 = sbr.rel (%p176) target = $region36
      $region35: #{tpu_custom_call.1} parent=5 // pred_region
        %s180 = ssub.s32 %s14, 1
        // Predicated region
        $region37: #{tpu_custom_call.1} parent=35 // pred_check
          %p181 = pneg %p103
        $region38: #{tpu_custom_call.1} parent=35 // pred_check_branch
          %183 = sbr.rel (%p181) target = $region40
        $region39: #{tpu_custom_call.1} parent=35 // pred_region
          %184 = dma.done [#allocation3], 1024
        $region40: #{tpu_custom_call.1} parent=35 // pred_fallthru
          _
        %p185 = scmp.lt.s32.totalorder %s19, 3
        %s186 = scalar_select %p185, %s19, 3
        %s187 = smul.addr %s186, 8
        %s188 = scalar_lea.vmem %s0, %s187
        %p189 = pneg %p40
        %p190 = pneg %p37
        %p191 = pneg %p61
        %p192 = pneg %p58
        %p193 = pneg %p82
        %p194 = pneg %p79
        %p195 = pneg %p103
        %p196 = pneg %p100
        %p197 = pneg %p129
        %p198 = pneg %p126
        %s199 = sand.u32 %s116, 1
        %s200 = scalar_lea.sflag [#allocation4], %s199
        %s201 = sand.u32 %s116, 1
        %s202 = smul.addr %s201, 8
        %s203 = scalar_lea.vmem [#allocation5], %s202
        %p204 = scmp.lt.s32.totalorder %s19, 3
        %s205 = scalar_select %p204, %s19, 3
        %s206 = smul.addr %s205, 8
        %s207 = scalar_lea.vmem %s0, %s206
        %v209 = vld [vmem:[%s207] sm:$0xff]
        %v210 = vld [vmem:[%s2] sm:$0xff]
        %v211 = vld [vmem:[%s2 + $0x8] sm:$0x3f]
        %v212 = vld [vmem:[%s1] sm:$0xff]
        %vm213 = vcmask 64512
        %v215 = vsel %vm213, %v209, 0
        %217 = vmatprep.subr.mxu0 0.0
        %218 = vmatpush1.msra.mxu0 0.0
        %219 = vmatprep.subr.mxu0 0.0
        %220 = vmatpush1.msra.mxu0 0.0
        %221 = vmatprep.subr.mxu0 0.0
        %222 = vmatpush1.msra.mxu0 0.0
        %223 = vmatprep.subr.mxu0 0.0
        %224 = vmatpush1.msra.mxu0 0.0
        %225 = vmatprep.subr.mxu0 0.0
        %226 = vmatpush1.msra.mxu0 0.0
        %227 = vmatprep.subr.mxu0 0.0
        %228 = vmatpush1.msra.mxu0 0.0
        %229 = vmatprep.subr.mxu0 0.0
        %230 = vmatpush1.msra.mxu0 0.0
        %231 = vmatprep.subr.mxu0 0.0
        %232 = vmatpush1.msra.mxu0 0.0
        %233 = vmatprep.subr.mxu0 0.0
        %234 = vmatpush1.msra.mxu0 0.0
        %235 = vmatprep.subr.mxu0 0.0
        %236 = vmatpush1.msra.mxu0 0.0
        %237 = vmatprep.subr.mxu0 0.0
        %238 = vmatpush1.msra.mxu0 0.0
        %239 = vmatprep.subr.mxu0 0.0
        %240 = vmatpush1.msra.mxu0 0.0
        %241 = vmatprep.subr.mxu0 0.0
        %242 = vmatpush1.msra.mxu0 0.0
        %243 = vmatprep.subr.mxu0 0.0
        %244 = vmatpush1.msra.mxu0 0.0
        %245 = vmatprep.subr.mxu0 0.0
        %246 = vmatpush1.msra.mxu0 0.0
        %247 = vmatprep.subr.mxu0 0.0
        %248 = vmatpush1.msra.mxu0 %v212
        %249 = vmatprep.subr.mxu0 0.0
        %250 = vmatpush2.msra.mxu0 0.0
        %251 = vmatprep.subr.mxu0 0.0
        %252 = vmatpush2.msra.mxu0 0.0
        %253 = vmatprep.subr.mxu0 0.0
        %254 = vmatpush2.msra.mxu0 0.0
        %255 = vmatprep.subr.mxu0 0.0
        %256 = vmatpush2.msra.mxu0 0.0
        %257 = vmatprep.subr.mxu0 0.0
        %258 = vmatpush2.msra.mxu0 0.0
        %259 = vmatprep.subr.mxu0 0.0
        %260 = vmatpush2.msra.mxu0 0.0
        %261 = vmatprep.subr.mxu0 0.0
        %262 = vmatpush2.msra.mxu0 0.0
        %263 = vmatprep.subr.mxu0 0.0
        %264 = vmatpush2.msra.mxu0 0.0
        %265 = vmatprep.subr.mxu0 0.0
        %266 = vmatpush2.msra.mxu0 0.0
        %267 = vmatprep.subr.mxu0 0.0
        %268 = vmatpush2.msra.mxu0 0.0
        %269 = vmatprep.subr.mxu0 0.0
        %270 = vmatpush2.msra.mxu0 0.0
        %271 = vmatprep.subr.mxu0 0.0
        %272 = vmatpush2.msra.mxu0 0.0
        %273 = vmatprep.subr.mxu0 0.0
        %274 = vmatpush2.msra.mxu0 0.0
        %275 = vmatprep.subr.mxu0 0.0
        %276 = vmatpush2.msra.mxu0 0.0
        %277 = vmatprep.subr.mxu0 0.0
        %278 = vmatpush2.msra.mxu0 0.0
        %279 = vmatprep.subr.mxu0 0.0
        %280 = vmatpush2.msra.mxu0 0.0
        %281 = vmatprep.mubr.f32.mxu0 0.0
        %282 = vmatmul.mubr.f32.gmra.mxu0 %v215
        %v283 = vpop.f32.mrf.mxu0
        %v284 = vadd.f32 0.0, %v283
        %v285 = vpop.f32.mrf.mxu0
        %286 = vdwg.mxu0
        %v287 = vlaneseq
        %v288 = vshrl.u32 %v287, 7
        %v289 = vsub.s32 0, %v288
        %v290 = vrot.slane %v210, %v289
        %vm291 = vcmp.ge.f32.partialorder %v284, %v290
        %v292 = vlaneseq
        %v293 = vshrl.u32 %v292, 7
        %v294 = vsub.s32 1, %v293
        %v295 = vrot.slane %v210, %v294
        %vm296 = vcmp.lt.f32.partialorder %v284, %v295
        %vm297 = vmand %vm291, %vm296
        %v298 = vsel %vm297, 1.0, 0.0
        %300 = vrot.lane.b32.xlu0 %v298, 127
        %v301 = vpop.permute.xlu0 %300
        %v303 = vlaneseq
        %v304 = vshrl.u32 %v303, 7
        %v305 = vsub.s32 2, %v304
        %v306 = vrot.slane %v210, %v305
        %v307 = vsub.f32 %v284, %v306
        %v308 = vlaneseq
        %v309 = vshrl.u32 %v308, 7
        %v310 = vsub.s32 4, %v309
        %v311 = vrot.slane %v210, %v310
        %v312 = vmul.f32 %v307, %v311
        %v313 = vmul.f32 %v312, %v298
        %v314 = vlaneseq
        %v315 = vshrl.u32 %v314, 7
        %v316 = vsub.s32 3, %v315
        %v317 = vrot.slane %v210, %v316
        %v318 = vsub.f32 %v317, %v284
        %v319 = vlaneseq
        %v320 = vshrl.u32 %v319, 7
        %v321 = vsub.s32 5, %v320
        %v322 = vrot.slane %v210, %v321
        %v323 = vmul.f32 %v318, %v322
        %v324 = vmul.f32 %v323, %v301
        %v325 = vadd.f32 %v313, %v324
        %327 = vrot.lane.b32.xlu0 %v325, 127
        %v328 = vpop.permute.xlu0 %327
        %v330 = vlaneseq
        %v331 = vshrl.u32 %v330, 7
        %v332 = vsub.s32 6, %v331
        %v333 = vrot.slane %v210, %v332
        %v334 = vsub.f32 %v284, %v333
        %v335 = vlaneseq
        %v336 = vshrl.u32 %v335, 7
        %v337 = vsub.s32 0, %v336
        %v338 = vrot.slane %v211, %v337
        %v339 = vmul.f32 %v334, %v338
        %v340 = vmul.f32 %v339, %v325
        %v341 = vlaneseq
        %v342 = vshrl.u32 %v341, 7
        %v343 = vsub.s32 7, %v342
        %v344 = vrot.slane %v210, %v343
        %v345 = vsub.f32 %v344, %v284
        %v346 = vlaneseq
        %v347 = vshrl.u32 %v346, 7
        %v348 = vsub.s32 1, %v347
        %v349 = vrot.slane %v211, %v348
        %v350 = vmul.f32 %v345, %v349
        %v351 = vmul.f32 %v350, %v328
        %v352 = vadd.f32 %v340, %v351
        %354 = vrot.lane.b32.xlu0 %v352, 127
        %v355 = vpop.permute.xlu0 %354
        %v357 = vlaneseq
        %v358 = vshrl.u32 %v357, 7
        %v359 = vsub.s32 2, %v358
        %v360 = vrot.slane %v211, %v359
        %v361 = vsub.f32 %v284, %v360
        %v362 = vlaneseq
        %v363 = vshrl.u32 %v362, 7
        %v364 = vsub.s32 4, %v363
        %v365 = vrot.slane %v211, %v364
        %v366 = vmul.f32 %v361, %v365
        %v367 = vmul.f32 %v366, %v352
        %v368 = vlaneseq
        %v369 = vshrl.u32 %v368, 7
        %v370 = vsub.s32 3, %v369
        %v371 = vrot.slane %v211, %v370
        %v372 = vsub.f32 %v371, %v284
        %v373 = vlaneseq
        %v374 = vshrl.u32 %v373, 7
        %v375 = vsub.s32 5, %v374
        %v376 = vrot.slane %v211, %v375
        %v377 = vmul.f32 %v372, %v376
        %v378 = vmul.f32 %v377, %v355
        %v379 = vadd.f32 %v367, %v378
        %v380 = vpack.c.bf16 %v379, %v379
        %v381 = vld [vmem:[#allocation2] sm:$0xf]
        %v382 = vld [vmem:[#allocation2 + $0x4] sm:$0xf]
        %v383 = vld [vmem:[#allocation2 + $0x8] sm:$0xf]
        %v384 = vld [vmem:[#allocation2 + $0xc] sm:$0xf]
        %v385 = vld [vmem:[#allocation2 + $0x10] sm:$0xf]
        %v386 = vld [vmem:[#allocation2 + $0x14] sm:$0xf]
        %v387 = vld [vmem:[#allocation2 + $0x18] sm:$0xf]
        %v388 = vld [vmem:[#allocation2 + $0x1c] sm:$0xf]
        %v389 = vld [vmem:[#allocation2 + $0x20] sm:$0xf]
        %v390 = vld [vmem:[#allocation2 + $0x24] sm:$0xf]
        %v391 = vld [vmem:[#allocation2 + $0x28] sm:$0xf]
        %v392 = vld [vmem:[#allocation2 + $0x2c] sm:$0xf]
        %v393 = vld [vmem:[#allocation2 + $0x30] sm:$0xf]
        %v394 = vld [vmem:[#allocation2 + $0x34] sm:$0xf]
        %v395 = vld [vmem:[#allocation2 + $0x38] sm:$0xf]
        %v396 = vld [vmem:[#allocation2 + $0x3c] sm:$0xf]
        %v413 = vunpack.c.l.b16 %v381
        %v414 = vunpack.c.l.b16 %v382
        %v415 = vunpack.c.l.b16 %v383
        %v416 = vunpack.c.l.b16 %v384
        %v417 = vunpack.c.l.b16 %v385
        %v418 = vunpack.c.l.b16 %v386
        %v419 = vunpack.c.l.b16 %v387
        %v420 = vunpack.c.l.b16 %v388
        %v421 = vunpack.c.l.b16 %v389
        %v422 = vunpack.c.l.b16 %v390
        %v423 = vunpack.c.l.b16 %v391
        %v424 = vunpack.c.l.b16 %v392
        %v425 = vunpack.c.l.b16 %v393
        %v426 = vunpack.c.l.b16 %v394
        %v427 = vunpack.c.l.b16 %v395
        %v428 = vunpack.c.l.b16 %v396
        %v429 = vpack.c.b16 %v414, %v413
        %v430 = vpack.c.b16 %v416, %v415
        %v431 = vpack.c.b16 %v418, %v417
        %v432 = vpack.c.b16 %v420, %v419
        %v433 = vpack.c.b16 %v422, %v421
        %v434 = vpack.c.b16 %v424, %v423
        %v435 = vpack.c.b16 %v426, %v425
        %v436 = vpack.c.b16 %v428, %v427
        %445 = vmatprep.subr.bf16.mxu0 0
        %446 = vmatpush1.bf16.msra.mxu0 %v436
        %447 = vmatprep.subr.bf16.mxu0 0
        %448 = vmatpush1.bf16.msra.mxu0 %v435
        %449 = vmatprep.subr.bf16.mxu0 0
        %450 = vmatpush1.bf16.msra.mxu0 %v434
        %451 = vmatprep.subr.bf16.mxu0 0
        %452 = vmatpush1.bf16.msra.mxu0 %v433
        %453 = vmatprep.subr.bf16.mxu0 0
        %454 = vmatpush1.bf16.msra.mxu0 %v432
        %455 = vmatprep.subr.bf16.mxu0 0
        %456 = vmatpush1.bf16.msra.mxu0 %v431
        %457 = vmatprep.subr.bf16.mxu0 0
        %458 = vmatpush1.bf16.msra.mxu0 %v430
        %459 = vmatprep.subr.bf16.mxu0 0
        %460 = vmatpush1.bf16.msra.mxu0 %v429
        %461 = vmatprep.subr.bf16.mxu0 0
        %462 = vmatpush2.bf16.msra.mxu0 0
        %463 = vmatprep.subr.bf16.mxu0 0
        %464 = vmatpush2.bf16.msra.mxu0 0
        %465 = vmatprep.subr.bf16.mxu0 0
        %466 = vmatpush2.bf16.msra.mxu0 0
        %467 = vmatprep.subr.bf16.mxu0 0
        %468 = vmatpush2.bf16.msra.mxu0 0
        %469 = vmatprep.subr.bf16.mxu0 0
        %470 = vmatpush2.bf16.msra.mxu0 0
        %471 = vmatprep.subr.bf16.mxu0 0
        %472 = vmatpush2.bf16.msra.mxu0 0
        %473 = vmatprep.subr.bf16.mxu0 0
        %474 = vmatpush2.bf16.msra.mxu0 0
        %475 = vmatprep.subr.bf16.mxu0 0
        %476 = vmatpush2.bf16.msra.mxu0 0
        %477 = vmatprep.mubr.bf16.mxu0 0
        %478 = vmatmul.mubr.bf16.gmra.mxu0 %v380
        %v479 = vpop.f32.mrf.mxu0
        %v480 = vadd.f32 0.0, %v479
        %v481 = vpop.f32.mrf.mxu0
        %v482 = vpop.f32.mrf.mxu0
        %v483 = vpop.f32.mrf.mxu0
        %484 = vdwg.mxu0
        %485 = vst [vmem:[%s203] sm:$0xff] %v480
        %s486 = sand.u32 %s116, 1
        %s487 = scalar_lea.sflag [#allocation4], %s486
        %s488 = sand.u32 %s116, 1
        %s489 = smul.addr %s488, 8
        %s490 = scalar_lea.vmem [#allocation5], %s489
        // Predicated region
        $region41: #{tpu_custom_call.1} parent=35 // pred_check
          %p491 = pneg %p126
        $region42: #{tpu_custom_call.1} parent=35 // pred_check_branch
          %493 = sbr.rel (%p491) target = $region44
        $region43: #{tpu_custom_call.1} parent=35 // pred_region
          %s495 = ssub.s32 128, 128
          %496 = vsyncadd %s487, %s495
          %s497 = smul.addr %s19, 128
          %s498 = scalar_lea.hbm %s4, %s497
          %s500 = sshll.u32 %s490, 4
          %s501 = int_to_ptr.vmem [resolvable:$true] %s500
          %503 = dma.vmem_to_hbm [thread:$0]  %s501, 128, %s498, %s487
        $region44: #{tpu_custom_call.1} parent=35 // pred_fallthru
          _
      $region36: #{tpu_custom_call.1} parent=5 // pred_fallthru
        _
      %p504 = scmp.le.s32.totalorder 2, %s14
      // Predicated region
      $region45: #{tpu_custom_call.1} parent=5 // pred_check
        %p505 = pneg %p504
      $region46: #{tpu_custom_call.1} parent=5 // pred_check_branch
        %507 = sbr.rel (%p505) target = $region48
      $region47: #{tpu_custom_call.1} parent=5 // pred_region
        %s508 = ssub.s32 %s14, 2
        // Predicated region
        $region49: #{tpu_custom_call.1} parent=47 // pred_check
          %p509 = pneg %p132
        $region50: #{tpu_custom_call.1} parent=47 // pred_check_branch
          %511 = sbr.rel (%p509) target = $region52
        $region51: #{tpu_custom_call.1} parent=47 // pred_region
          %s512 = sand.u32 %s117, 1
          %s513 = scalar_lea.sflag [#allocation4], %s512
          %s514 = sand.u32 %s117, 1
          %s515 = smul.addr %s514, 8
          %s516 = scalar_lea.vmem [#allocation5], %s515
          %517 = dma.done %s513, 128
        $region52: #{tpu_custom_call.1} parent=47 // pred_fallthru
          _
      $region48: #{tpu_custom_call.1} parent=5 // pred_fallthru
        _
    $region6: #{tpu_custom_call.1} parent=1 // loop_footer
      %s18 = sadd.s32 1, %s14
    $region7: #{tpu_custom_call.1} parent=1 // loop_footer_branch
      %13 = sbr.rel target = $region3
    $region8: #{tpu_custom_call.1} parent=1 // loop_exit
      _
    %518 = vsyncpa [#allocation3], 1
    %s519 = scalar_lea.sflag [#allocation3], 1
    %520 = vsyncpa %s519, 1
    %521 = vsyncpa [#allocation4], 1
    %s522 = scalar_lea.sflag [#allocation4], 1
    %523 = vsyncpa %s522, 1

</llo_original>
